<compile_context>
chip_gen: v7x
topology: tpu7x:2x2x1
jax: 0.10.0
libtpu: 0.0.40
codegen_flags: <defaults>
</compile_context>

<pallas_src>
import jax
import jax.numpy as jnp
from jax.experimental import pallas as pl
from jax.experimental.pallas import tpu as pltpu

IN_DIM = 9
HID = 64
OUT_DIM = 1
LANE = 128
TB_MAX = 16384   # ~0.7-0.9 KiB of VMEM temps per batch column -> <= ~15 MiB/step at the cap


def mlp_kernel(x_ref, w1_ref, w2_ref, b2_ref, w3_ref, b3_ref, o_ref):
    # x_ref: (IN_DIM+1, tb) bf16 -- batch on lanes; last row is ones (b1 folded into w1).
    x = x_ref[...]

    # layer1 (bias folded into augmented weight) + ReLU; cast back to bf16 for the next MXU pass.
    h1 = jnp.dot(w1_ref[...], x, preferred_element_type=jnp.float32)      # (HID, tb) f32
    h1 = jnp.maximum(h1, 0.0).astype(jnp.bfloat16)

    # layer2 + bias + ReLU (bias add / relu in f32 on the VPU).
    h2 = jnp.dot(w2_ref[...], h1, preferred_element_type=jnp.float32)     # (HID, tb) f32
    h2 = jnp.maximum(h2 + b2_ref[...], 0.0)

    # layer3: an M=1 matmul would waste the MXU -> VPU multiply + sublane (XLU) reduce.
    out = jnp.sum(w3_ref[...] * h2, axis=0, keepdims=True) + b3_ref[...]  # (1, tb) f32
    o_ref[...] = out.astype(o_ref.dtype)


def _round_up(v, m):
    return ((v + m - 1) // m) * m


def _select_tb(B, tb_req):
    """Lane-aligned batch tile, capped for VMEM, split for >=2 grid steps when possible."""
    bp_min = _round_up(max(B, 1), LANE)
    tb = _round_up(max(LANE, min(tb_req, TB_MAX)), LANE)
    if tb >= bp_min:
        # Whole batch would fit in one step: split it so v7x's two TensorCores both get work.
        tb = _round_up((bp_min + 1) // 2, LANE) if bp_min >= 2 * LANE else bp_min
    return tb


def pack_params(params):
    """PyTorch-layout params -> kernel-layout params (b1 folded into w1, bf16 matmul weights)."""
    w1, b1, w2, b2, w3, b3 = params
    w1_aug = jnp.concatenate([w1, b1], axis=1).astype(jnp.bfloat16)  # (HID, IN_DIM+1)
    w2_bf = w2.astype(jnp.bfloat16)                                  # (HID, HID)
    b2_f32 = b2.astype(jnp.float32)                                  # (HID, 1)
    w3_col = w3.T.astype(jnp.float32)                                # (HID, 1) column for VPU layer-3
    b3_f32 = b3.astype(jnp.float32)                                  # (1, 1)
    return w1_aug, w2_bf, b2_f32, w3_col, b3_f32


def basenet_forward(x, params, *, tb=8192):
    """x: (B, 9) float32. Returns (B, 1) float32.

    params = (w1, b1, w2, b2, w3, b3) in PyTorch layout:
      w1 (64, 9), b1 (64, 1), w2 (64, 64), b2 (64, 1), w3 (1, 64), b3 (1, 1)
    """
    w1a, w2, b2, w3c, b3 = pack_params(params)
    B = x.shape[0]

    tb = _select_tb(B, tb)
    Bp = _round_up(B, tb)
    grid = (Bp // tb,)

    # Single fused relayout pass over x: cast to bf16, append the ones feature column
    # (folds b1 into w1) and pad the batch up to Bp, then transpose so batch is on lanes.
    # Padded batch columns (value 1) are computed and sliced off afterwards -- harmless.
    x_aug = jnp.pad(x.astype(jnp.bfloat16), ((0, Bp - B), (0, 1)), constant_values=1)
    x_t = x_aug.T                                                    # (IN_DIM+1, Bp)

    resident = lambda shape: pl.BlockSpec(shape, lambda i: (0, 0))   # grid-resident weights/biases

    out_t = pl.pallas_call(
        mlp_kernel,
        out_shape=jax.ShapeDtypeStruct((OUT_DIM, Bp), jnp.float32),
        grid_spec=pltpu.PrefetchScalarGridSpec(
            num_scalar_prefetch=0,
            grid=grid,
            in_specs=[
                pl.BlockSpec((IN_DIM + 1, tb), lambda i: (0, i)),    # x tile (batch on lanes)
                resident((HID, IN_DIM + 1)),                         # w1 (b1 folded in)
                resident((HID, HID)),                                # w2
                resident((HID, 1)),                                  # b2 (lane-broadcast)
                resident((HID, 1)),                                  # w3 as column (VPU layer-3)
                resident((OUT_DIM, 1)),                              # b3
            ],
            out_specs=pl.BlockSpec((OUT_DIM, tb), lambda i: (0, i)),
        ),
        compiler_params=pltpu.CompilerParams(
            dimension_semantics=("parallel",),        # lets v7x shard grid steps across its 2 TCs
            vmem_limit_bytes=48 * 1024 * 1024,        # > v5e's 16 MiB scoped default, < v7x's 64 MiB
        ),
    )(x_t, w1a, w2, b2, w3c, b3)

    # (OUT_DIM, Bp) -> (B, OUT_DIM), dropping padded columns.
    return out_t[:, :B].T


def init_params(key):
    """Deterministic init mimicking nn.Linear's uniform(-1/sqrt(fan_in), +1/sqrt(fan_in)).

    Weights in PyTorch (out, in) layout; biases as (out, 1) columns.
    """
    k1, k2, k3, k4, k5, k6 = jax.random.split(key, 6)

    def lin(kw, kb, fan_in, fan_out):
        bound = 1.0 / jnp.sqrt(fan_in)
        w = jax.random.uniform(kw, (fan_out, fan_in), jnp.float32, -bound, bound)
        b = jax.random.uniform(kb, (fan_out, 1), jnp.float32, -bound, bound)
        return w, b

    w1, b1 = lin(k1, k2, IN_DIM, HID)
    w2, b2 = lin(k3, k4, HID, HID)
    w3, b3 = lin(k5, k6, HID, OUT_DIM)
    return (w1, b1, w2, b2, w3, b3)


def basenet_ref_f32(x, params):
    """Pure-f32 reference (matches the PyTorch module exactly)."""
    w1, b1, w2, b2, w3, b3 = params
    h1 = jnp.maximum(x @ w1.T + b1.T, 0.0)
    h2 = jnp.maximum(h1 @ w2.T + b2.T, 0.0)
    return h2 @ w3.T + b3.T


def basenet_ref_bf16(x, params):
    """Reference that mirrors the kernel's bf16-matmul / f32-accumulate numerics."""
    w1, b1, w2, b2, w3, b3 = params
    ones = jnp.ones((x.shape[0], 1), x.dtype)
    xa = jnp.concatenate([x, ones], axis=1).astype(jnp.bfloat16)
    w1a = jnp.concatenate([w1, b1], axis=1).astype(jnp.bfloat16)
    h1 = jnp.maximum(jnp.dot(xa, w1a.T, preferred_element_type=jnp.float32), 0.0)
    h1 = h1.astype(jnp.bfloat16)
    h2 = jnp.dot(h1, w2.astype(jnp.bfloat16).T, preferred_element_type=jnp.float32) + b2.T
    h2 = jnp.maximum(h2, 0.0)
    return jnp.dot(h2, w3.T, preferred_element_type=jnp.float32) + b3.T


if __name__ == "__main__":
    key = jax.random.PRNGKey(0)
    kx, kp = jax.random.split(key)

    # Ragged (non-multiple-of-128) batch to exercise wrapper-side padding; the tile
    # clamp splits it into 2 grid steps so a v7x's two TensorCores both get work.
    B = 200
    x = jax.random.normal(kx, (B, IN_DIM), jnp.float32)
    params = init_params(kp)

    out = basenet_forward(x, params)
    out = jax.block_until_ready(out)
    assert out.shape == (B, OUT_DIM)

    # Tight check against a reference with identical bf16-matmul numerics.
    ref_bf16 = basenet_ref_bf16(x, params)
    assert jnp.allclose(out, ref_bf16, atol=1e-3, rtol=1e-3), "mismatch vs bf16-matched reference"

    # Looser sanity check against the pure-f32 PyTorch-equivalent forward.
    ref_f32 = basenet_ref_f32(x, params)
    assert jnp.allclose(out, ref_f32, atol=1e-1, rtol=1e-1), "mismatch vs f32 reference"

    print("KERNEL_OK")
</pallas_src>

<mosaic_0001>
module attributes {stable_mosaic.version = 11 : i64} {
  func.func @mlp_kernel(%arg0: i32, %arg1: memref<10x128xbf16, #tpu.memory_space<vmem>>, %arg2: memref<64x10xbf16, #tpu.memory_space<vmem>>, %arg3: memref<64x64xbf16, #tpu.memory_space<vmem>>, %arg4: memref<64x1xf32, #tpu.memory_space<vmem>>, %arg5: memref<64x1xf32, #tpu.memory_space<vmem>>, %arg6: memref<1x1xf32, #tpu.memory_space<vmem>>, %arg7: memref<1x128xf32, #tpu.memory_space<vmem>>) attributes {dimension_semantics = [#tpu.dimension_semantics<parallel>], iteration_bounds = array<i64: 2>, scalar_prefetch = 0 : i64, scratch_operands = 0 : i64, tpu.core_type = #tpu.core_type<tc>, window_params = [{transform_indices = @transform_0, window_bounds = array<i64: 10, 128>}, {pipeline_mode = #tpu.pipeline_mode<synchronous>, transform_indices = @transform_1, window_bounds = array<i64: 64, 10>}, {pipeline_mode = #tpu.pipeline_mode<synchronous>, transform_indices = @transform_2, window_bounds = array<i64: 64, 64>}, {pipeline_mode = #tpu.pipeline_mode<synchronous>, transform_indices = @transform_3, window_bounds = array<i64: 64, 1>}, {pipeline_mode = #tpu.pipeline_mode<synchronous>, transform_indices = @transform_4, window_bounds = array<i64: 64, 1>}, {pipeline_mode = #tpu.pipeline_mode<synchronous>, transform_indices = @transform_5, window_bounds = array<i64: 1, 1>}, {transform_indices = @transform_6, window_bounds = array<i64: 1, 128>}]} {
    %c0 = arith.constant 0 : index
    %c0_0 = arith.constant 0 : index
    %0 = vector.load %arg1[%c0, %c0_0] : memref<10x128xbf16, #tpu.memory_space<vmem>>, vector<10x128xbf16>
    %c0_1 = arith.constant 0 : index
    %c0_2 = arith.constant 0 : index
    %1 = vector.load %arg2[%c0_1, %c0_2] : memref<64x10xbf16, #tpu.memory_space<vmem>>, vector<64x10xbf16>
    %cst = arith.constant dense<0.000000e+00> : vector<64x128xf32>
    %2 = tpu.matmul %1, %0, %cst {dimension_numbers = #tpu.dot_dimension_numbers<[1], [0], [0], [1], [0, 0, 1, 1], [], []>} : vector<64x10xbf16>, vector<10x128xbf16>, vector<64x128xf32> -> vector<64x128xf32>
    %cst_3 = arith.constant 0.000000e+00 : f32
    %3 = vector.broadcast %cst_3 : f32 to vector<64x128xf32>
    %4 = arith.maximumf %2, %3 : vector<64x128xf32>
    %5 = arith.truncf %4 : vector<64x128xf32> to vector<64x128xbf16>
    %c0_4 = arith.constant 0 : index
    %c0_5 = arith.constant 0 : index
    %6 = vector.load %arg3[%c0_4, %c0_5] : memref<64x64xbf16, #tpu.memory_space<vmem>>, vector<64x64xbf16>
    %cst_6 = arith.constant dense<0.000000e+00> : vector<64x128xf32>
    %7 = tpu.matmul %6, %5, %cst_6 {dimension_numbers = #tpu.dot_dimension_numbers<[1], [0], [0], [1], [0, 0, 1, 1], [], []>} : vector<64x64xbf16>, vector<64x128xbf16>, vector<64x128xf32> -> vector<64x128xf32>
    %c0_7 = arith.constant 0 : index
    %c0_8 = arith.constant 0 : index
    %8 = vector.load %arg4[%c0_7, %c0_8] : memref<64x1xf32, #tpu.memory_space<vmem>>, vector<64x1xf32>
    %9 = vector.broadcast %8 : vector<64x1xf32> to vector<64x128xf32>
    %10 = arith.addf %7, %9 : vector<64x128xf32>
    %cst_9 = arith.constant 0.000000e+00 : f32
    %11 = vector.broadcast %cst_9 : f32 to vector<64x128xf32>
    %12 = arith.maximumf %10, %11 : vector<64x128xf32>
    %c0_10 = arith.constant 0 : index
    %c0_11 = arith.constant 0 : index
    %13 = vector.load %arg5[%c0_10, %c0_11] : memref<64x1xf32, #tpu.memory_space<vmem>>, vector<64x1xf32>
    %14 = vector.broadcast %13 : vector<64x1xf32> to vector<64x128xf32>
    %15 = arith.mulf %14, %12 : vector<64x128xf32>
    %cst_12 = arith.constant dense<0.000000e+00> : vector<128xf32>
    %16 = vector.multi_reduction <add>, %15, %cst_12 [0] : vector<64x128xf32> to vector<128xf32>
    %17 = vector.shape_cast %16 : vector<128xf32> to vector<1x128xf32>
    %c0_13 = arith.constant 0 : index
    %c0_14 = arith.constant 0 : index
    %18 = vector.load %arg6[%c0_13, %c0_14] : memref<1x1xf32, #tpu.memory_space<vmem>>, vector<1x1xf32>
    %19 = vector.broadcast %18 : vector<1x1xf32> to vector<1x128xf32>
    %20 = arith.addf %17, %19 : vector<1x128xf32>
    %c0_15 = arith.constant 0 : index
    %c0_16 = arith.constant 0 : index
    %21 = vector.load %arg7[%c0_15, %c0_16] : memref<1x128xf32, #tpu.memory_space<vmem>>, vector<1x128xf32>
    tpu.vector_store %arg7[%c0_15, %c0_16], %20 {strides = array<i32>} : memref<1x128xf32, #tpu.memory_space<vmem>>, vector<1x128xf32>,
    return
  }
  func.func @transform_0(%arg0: i32) -> (i32, i32) {
    %c0_i32 = arith.constant 0 : i32
    %c0_i32_0 = arith.constant 0 : i32
    return %c0_i32, %arg0 : i32, i32
  }
  func.func @transform_1(%arg0: i32) -> (i32, i32) {
    %c0_i32 = arith.constant 0 : i32
    %c0_i32_0 = arith.constant 0 : i32
    %c0_i32_1 = arith.constant 0 : i32
    return %c0_i32, %c0_i32_0 : i32, i32
  }
  func.func @transform_2(%arg0: i32) -> (i32, i32) {
    %c0_i32 = arith.constant 0 : i32
    %c0_i32_0 = arith.constant 0 : i32
    %c0_i32_1 = arith.constant 0 : i32
    return %c0_i32, %c0_i32_0 : i32, i32
  }
  func.func @transform_3(%arg0: i32) -> (i32, i32) {
    %c0_i32 = arith.constant 0 : i32
    %c0_i32_0 = arith.constant 0 : i32
    %c0_i32_1 = arith.constant 0 : i32
    return %c0_i32, %c0_i32_0 : i32, i32
  }
  func.func @transform_4(%arg0: i32) -> (i32, i32) {
    %c0_i32 = arith.constant 0 : i32
    %c0_i32_0 = arith.constant 0 : i32
    %c0_i32_1 = arith.constant 0 : i32
    return %c0_i32, %c0_i32_0 : i32, i32
  }
  func.func @transform_5(%arg0: i32) -> (i32, i32) {
    %c0_i32 = arith.constant 0 : i32
    %c0_i32_0 = arith.constant 0 : i32
    %c0_i32_1 = arith.constant 0 : i32
    return %c0_i32, %c0_i32_0 : i32, i32
  }
  func.func @transform_6(%arg0: i32) -> (i32, i32) {
    %c0_i32 = arith.constant 0 : i32
    %c0_i32_0 = arith.constant 0 : i32
    return %c0_i32, %arg0 : i32, i32
  }
}

</mosaic_0001>

<llo_original>
// kernel: tpu_custom_call.1
$region0: #{tpu_custom_call.1}
  #allocation0 [shape = 'u32[]', space=smem, size = 0x4, offset = 0x4, fixed_abs, tag = 'smem constant byte address 0x4 - core index']
  #allocation1 [shape = 'u32[144,128]{1,0:T(1,128)}', space=vmem, size = 0x12000, scoped, tag = 'internal scratch']
  #allocation2 [shape = 'f32[1,1]{1,0:T(1,128)S(1)}', space=vmem, size = 0x200, scoped, tag = 'scoped memory for tpu_custom_call.1']
  %s0 = inlined_call_operand.vmem [shape: bf16[10,256], index: 0, kind: input, shape index: {}]
  %s1 = inlined_call_operand.vmem [shape: bf16[64,10], index: 1, kind: input, shape index: {}]
  %s2 = inlined_call_operand.vmem [shape: bf16[64,64], index: 2, kind: input, shape index: {}]
  %s3 = inlined_call_operand.vmem [shape: f32[64,1], index: 3, kind: input, shape index: {}]
  %s4 = inlined_call_operand.vmem [shape: f32[64,1], index: 4, kind: input, shape index: {}]
  %s5 = inlined_call_operand.<no memory space> [shape: f32[1,1], index: 5, kind: input, shape index: {}]
  %s6 = inlined_call_operand.hbm [shape: f32[1,256], index: 6, kind: output, shape index: {}]
  %s7 = sld [smem:[#allocation0]]
  $region98: #{tpu_custom_call.1} parent=0
    _
  %s9 = ssub.s32 1, %s7
  %s10 = scalar_select 0, %s9, %s7
  %v11 = vstv %s5
  %12 = vst [vmem:[#allocation2] sm:$0x1] %v11
  $region1: #{tpu_custom_call.1} parent=0
    #allocation3 [shape = 'u8[8192]{0}', space=vmem, size = 0x2000, scoped, tag = 'input window, operand 0']
    #allocation4 [shape = 'u8[1024]{0}', space=vmem, size = 0x400, scoped, tag = 'output window, operand 0']
    #allocation5 [shape = 's32[2]{0}', space=sflag, size = 0x8, scoped, tag = 'scoped memory for tpu_custom_call.1']
    %13 = vsyncpa [#allocation5], 0
    %s14 = scalar_lea.sflag [#allocation5], 1
    %15 = vsyncpa %s14, 0
    loop: start=0, step=1, limit=4
    $region2: #{tpu_custom_call.1} parent=1 // loop_pre_header
      _
    $region3: #{tpu_custom_call.1} parent=1 // loop_header
      %s17 = sphi 0, %s21
      %p18 = scmp.ge.s32.totalorder %s17, 4
      %s27 = sphi 0, %s29
      %s30 = sphi 0, %s27
      %s31 = sphi 0, %s30
      %s47 = sphi 0, %s31
      %s51 = sphi 0, %s51
      %s53 = sphi 0, %s51
      %s54 = sphi 0, %s53
      %s68 = sphi 0, %s54
      %s72 = sphi 0, %s72
      %s74 = sphi 0, %s72
      %s75 = sphi 0, %s74
      %s89 = sphi 0, %s75
      %s93 = sphi 0, %s93
      %s95 = sphi 0, %s93
      %s96 = sphi 0, %s95
      %s110 = sphi 0, %s96
      %s114 = sphi 0, %s114
      %s116 = sphi 0, %s114
      %s117 = sphi 0, %s116
      %s131 = sphi 0, %s117
      %s135 = sphi 0, %s135
      %s137 = sphi 0, %s135
      %s138 = sphi 0, %s137
      %s152 = sphi 0, %s138
      %s158 = sphi 0, %s160
      %s161 = sphi 0, %s158
      %s162 = sphi 0, %s161
      %s178 = sphi 0, %s162
    $region4: #{tpu_custom_call.1} parent=1 // loop_header_branch
      %20 = sbr.rel (%p18) target = $region8
    $region5: #{tpu_custom_call.1} parent=1 // loop_body
      %s22 = ssub.s32 %s17, 1
      %s23 = ssub.s32 %s17, 2
      %s24 = sadd.s32 %s17, 1
      %s25 = ssub.s32 %s17, %s24
      %p26 = scmp.eq.s32.totalorder %s25, 0
      %s28 = sadd.s32 %s27, 1
      %s29 = scalar_select %p26, %s27, %s28
      %p32 = pneg %p26
      %p33 = scmp.eq.s32.totalorder %s17, 1
      %p34 = por %p32, %p33
      %p35 = scmp.ne.s32.totalorder %s27, %s30
      %p36 = scmp.eq.s32.totalorder %s17, 0
      %p37 = por %p35, %p36
      %p38 = scmp.ne.s32.totalorder %s27, %s30
      %p39 = scmp.eq.s32.totalorder %s22, 1
      %p40 = por %p38, %p39
      %p41 = scmp.ne.s32.totalorder %s30, %s31
      %p42 = scmp.eq.s32.totalorder %s22, 0
      %p43 = por %p41, %p42
      %p44 = scmp.ne.s32.totalorder %s30, %s31
      %p45 = scmp.eq.s32.totalorder %s23, 1
      %p46 = por %p44, %p45
      %p48 = scmp.ne.s32.totalorder %s31, %s47
      %p49 = scmp.eq.s32.totalorder %s23, 0
      %p50 = por %p48, %p49
      %s52 = sadd.s32 %s51, 1
      %p55 = scmp.eq.s32.totalorder %s17, 1
      %p56 = scmp.ne.s32.totalorder %s51, %s53
      %p57 = scmp.eq.s32.totalorder %s17, 0
      %p58 = por %p56, %p57
      %p59 = scmp.ne.s32.totalorder %s51, %s53
      %p60 = scmp.eq.s32.totalorder %s22, 1
      %p61 = por %p59, %p60
      %p62 = scmp.ne.s32.totalorder %s53, %s54
      %p63 = scmp.eq.s32.totalorder %s22, 0
      %p64 = por %p62, %p63
      %p65 = scmp.ne.s32.totalorder %s53, %s54
      %p66 = scmp.eq.s32.totalorder %s23, 1
      %p67 = por %p65, %p66
      %p69 = scmp.ne.s32.totalorder %s54, %s68
      %p70 = scmp.eq.s32.totalorder %s23, 0
      %p71 = por %p69, %p70
      %s73 = sadd.s32 %s72, 1
      %p76 = scmp.eq.s32.totalorder %s17, 1
      %p77 = scmp.ne.s32.totalorder %s72, %s74
      %p78 = scmp.eq.s32.totalorder %s17, 0
      %p79 = por %p77, %p78
      %p80 = scmp.ne.s32.totalorder %s72, %s74
      %p81 = scmp.eq.s32.totalorder %s22, 1
      %p82 = por %p80, %p81
      %p83 = scmp.ne.s32.totalorder %s74, %s75
      %p84 = scmp.eq.s32.totalorder %s22, 0
      %p85 = por %p83, %p84
      %p86 = scmp.ne.s32.totalorder %s74, %s75
      %p87 = scmp.eq.s32.totalorder %s23, 1
      %p88 = por %p86, %p87
      %p90 = scmp.ne.s32.totalorder %s75, %s89
      %p91 = scmp.eq.s32.totalorder %s23, 0
      %p92 = por %p90, %p91
      %s94 = sadd.s32 %s93, 1
      %p97 = scmp.eq.s32.totalorder %s17, 1
      %p98 = scmp.ne.s32.totalorder %s93, %s95
      %p99 = scmp.eq.s32.totalorder %s17, 0
      %p100 = por %p98, %p99
      %p101 = scmp.ne.s32.totalorder %s93, %s95
      %p102 = scmp.eq.s32.totalorder %s22, 1
      %p103 = por %p101, %p102
      %p104 = scmp.ne.s32.totalorder %s95, %s96
      %p105 = scmp.eq.s32.totalorder %s22, 0
      %p106 = por %p104, %p105
      %p107 = scmp.ne.s32.totalorder %s95, %s96
      %p108 = scmp.eq.s32.totalorder %s23, 1
      %p109 = por %p107, %p108
      %p111 = scmp.ne.s32.totalorder %s96, %s110
      %p112 = scmp.eq.s32.totalorder %s23, 0
      %p113 = por %p111, %p112
      %s115 = sadd.s32 %s114, 1
      %p118 = scmp.eq.s32.totalorder %s17, 1
      %p119 = scmp.ne.s32.totalorder %s114, %s116
      %p120 = scmp.eq.s32.totalorder %s17, 0
      %p121 = por %p119, %p120
      %p122 = scmp.ne.s32.totalorder %s114, %s116
      %p123 = scmp.eq.s32.totalorder %s22, 1
      %p124 = por %p122, %p123
      %p125 = scmp.ne.s32.totalorder %s116, %s117
      %p126 = scmp.eq.s32.totalorder %s22, 0
      %p127 = por %p125, %p126
      %p128 = scmp.ne.s32.totalorder %s116, %s117
      %p129 = scmp.eq.s32.totalorder %s23, 1
      %p130 = por %p128, %p129
      %p132 = scmp.ne.s32.totalorder %s117, %s131
      %p133 = scmp.eq.s32.totalorder %s23, 0
      %p134 = por %p132, %p133
      %s136 = sadd.s32 %s135, 1
      %p139 = scmp.eq.s32.totalorder %s17, 1
      %p140 = scmp.ne.s32.totalorder %s135, %s137
      %p141 = scmp.eq.s32.totalorder %s17, 0
      %p142 = por %p140, %p141
      %p143 = scmp.ne.s32.totalorder %s135, %s137
      %p144 = scmp.eq.s32.totalorder %s22, 1
      %p145 = por %p143, %p144
      %p146 = scmp.ne.s32.totalorder %s137, %s138
      %p147 = scmp.eq.s32.totalorder %s22, 0
      %p148 = por %p146, %p147
      %p149 = scmp.ne.s32.totalorder %s137, %s138
      %p150 = scmp.eq.s32.totalorder %s23, 1
      %p151 = por %p149, %p150
      %p153 = scmp.ne.s32.totalorder %s138, %s152
      %p154 = scmp.eq.s32.totalorder %s23, 0
      %p155 = por %p153, %p154
      %s156 = ssub.s32 %s17, %s24
      %p157 = scmp.eq.s32.totalorder %s156, 0
      %s159 = sadd.s32 %s158, 1
      %s160 = scalar_select %p157, %s158, %s159
      %p163 = pneg %p157
      %p164 = scmp.eq.s32.totalorder %s17, 1
      %p165 = por %p163, %p164
      %p166 = scmp.ne.s32.totalorder %s158, %s161
      %p167 = scmp.eq.s32.totalorder %s17, 0
      %p168 = por %p166, %p167
      %p169 = scmp.ne.s32.totalorder %s158, %s161
      %p170 = scmp.eq.s32.totalorder %s22, 1
      %p171 = por %p169, %p170
      %p172 = scmp.ne.s32.totalorder %s161, %s162
      %p173 = scmp.eq.s32.totalorder %s22, 0
      %p174 = por %p172, %p173
      %p175 = scmp.ne.s32.totalorder %s161, %s162
      %p176 = scmp.eq.s32.totalorder %s23, 1
      %p177 = por %p175, %p176
      %p179 = scmp.ne.s32.totalorder %s162, %s178
      %p180 = scmp.eq.s32.totalorder %s23, 0
      %p181 = por %p179, %p180
      %p182 = scmp.le.s32.totalorder 1, %s17
      %p183 = scmp.lt.s32.totalorder %s17, 3
      %p184 = pnand %p182, %p183
      %p185 = pneg %p184
      // Predicated region
      $region9: #{tpu_custom_call.1} parent=5 // pred_check
        _
      $region10: #{tpu_custom_call.1} parent=5 // pred_check_branch
        %187 = sbr.rel (%p184) target = $region12
      $region11: #{tpu_custom_call.1} parent=5 // pred_region
        %s188 = ssub.s32 %s17, 1
        // Predicated region
        $region13: #{tpu_custom_call.1} parent=11 // pred_check
          %p189 = pneg %p64
        $region14: #{tpu_custom_call.1} parent=11 // pred_check_branch
          %191 = sbr.rel (%p189) target = $region16
        $region15: #{tpu_custom_call.1} parent=11 // pred_region
          _
        $region16: #{tpu_custom_call.1} parent=11 // pred_fallthru
          _
        // Predicated region
        $region17: #{tpu_custom_call.1} parent=11 // pred_check
          %p192 = pneg %p85
        $region18: #{tpu_custom_call.1} parent=11 // pred_check_branch
          %194 = sbr.rel (%p192) target = $region20
        $region19: #{tpu_custom_call.1} parent=11 // pred_region
          _
        $region20: #{tpu_custom_call.1} parent=11 // pred_fallthru
          _
        // Predicated region
        $region21: #{tpu_custom_call.1} parent=11 // pred_check
          %p195 = pneg %p106
        $region22: #{tpu_custom_call.1} parent=11 // pred_check_branch
          %197 = sbr.rel (%p195) target = $region24
        $region23: #{tpu_custom_call.1} parent=11 // pred_region
          _
        $region24: #{tpu_custom_call.1} parent=11 // pred_fallthru
          _
        // Predicated region
        $region25: #{tpu_custom_call.1} parent=11 // pred_check
          %p198 = pneg %p127
        $region26: #{tpu_custom_call.1} parent=11 // pred_check_branch
          %200 = sbr.rel (%p198) target = $region28
        $region27: #{tpu_custom_call.1} parent=11 // pred_region
          _
        $region28: #{tpu_custom_call.1} parent=11 // pred_fallthru
          _
        // Predicated region
        $region29: #{tpu_custom_call.1} parent=11 // pred_check
          %p201 = pneg %p148
        $region30: #{tpu_custom_call.1} parent=11 // pred_check_branch
          %203 = sbr.rel (%p201) target = $region32
        $region31: #{tpu_custom_call.1} parent=11 // pred_region
          _
        $region32: #{tpu_custom_call.1} parent=11 // pred_fallthru
          _
      $region12: #{tpu_custom_call.1} parent=5 // pred_fallthru
        _
      %p204 = scmp.lt.s32.totalorder %s17, 2
      // Predicated region
      $region33: #{tpu_custom_call.1} parent=5 // pred_check
        %p205 = pneg %p204
      $region34: #{tpu_custom_call.1} parent=5 // pred_check_branch
        %207 = sbr.rel (%p205) target = $region36
      $region35: #{tpu_custom_call.1} parent=5 // pred_region
        // Predicated region
        $region37: #{tpu_custom_call.1} parent=35 // pred_check
          %p208 = pneg %p37
        $region38: #{tpu_custom_call.1} parent=35 // pred_check_branch
          %210 = sbr.rel (%p208) target = $region40
        $region39: #{tpu_custom_call.1} parent=35 // pred_region
          %s211 = sand.u32 %s27, 1
          %s212 = sand.u32 %s27, 1
          %s213 = smul.addr %s212, 8
          %s214 = scalar_lea.vmem [#allocation3], %s213
          %s215 = smul.addr %s17, 4
          %s216 = scalar_lea.vmem %s0, %s215
          // Predicated region
          $region41: #{tpu_custom_call.1} parent=39 // pred_check
            _
          $region42: #{tpu_custom_call.1} parent=39 // pred_check_branch
            %218 = sbr.rel (0) target = $region44
          $region43: #{tpu_custom_call.1} parent=39 // pred_region
            // Predicated region
            $region45: #{tpu_custom_call.1} parent=43 // pred_check
              _
            $region46: #{tpu_custom_call.1} parent=43 // pred_check_branch
              %220 = sbr.rel target = $region48
            $region47: #{tpu_custom_call.1} parent=43 // pred_region
              // Predicated region
              $region60: #{tpu_custom_call.1} parent=47 // pred_check
                _
              $region61: #{tpu_custom_call.1} parent=47 // pred_check_branch
                %237 = sbr.rel (0) target = $region63
              $region62: #{tpu_custom_call.1} parent=47 // pred_region
                loop: start=0, step=1, limit=1
                $region64: #{tpu_custom_call.1} parent=62 // loop_pre_header
                  _
                $region65: #{tpu_custom_call.1} parent=62 // loop_header
                  %s239 = sphi 0, %s243
                  %p240 = scmp.ge.s32.totalorder %s239, 1
                  %s244 = sphi %s216, %s216
                  %s245 = sphi %s214, %s214
                $region66: #{tpu_custom_call.1} parent=62 // loop_header_branch
                  %242 = sbr.rel (%p240) target = $region70
                $region67: #{tpu_custom_call.1} parent=62 // loop_body
                  _
                $region68: #{tpu_custom_call.1} parent=62 // loop_footer
                  %s243 = sadd.s32 1, %s239
                $region69: #{tpu_custom_call.1} parent=62 // loop_footer_branch
                  %238 = sbr.rel target = $region65
                $region70: #{tpu_custom_call.1} parent=62 // loop_exit
                  _
                loop: start=0, step=1, limit=1
                $region71: #{tpu_custom_call.1} parent=62 // loop_pre_header
                  _
                $region72: #{tpu_custom_call.1} parent=62 // loop_header
                  %s248 = sphi 0, %s252
                  %p249 = scmp.ge.s32.totalorder %s248, 1
                  %s253 = sphi %s216, %s216
                  %s254 = sphi %s214, %s214
                $region73: #{tpu_custom_call.1} parent=62 // loop_header_branch
                  %251 = sbr.rel (%p249) target = $region77
                $region74: #{tpu_custom_call.1} parent=62 // loop_body
                  %v255 = vld [vmem:[%s253] sm:$0xf]
                  %256 = vst [vmem:[%s254] sm:$0xf] %v255
                  %v257 = vld [vmem:[%s253 + $0x8] sm:$0xf]
                  %258 = vst [vmem:[%s254 + $0x4] sm:$0xf] %v257
                $region75: #{tpu_custom_call.1} parent=62 // loop_footer
                  %s252 = sadd.s32 1, %s248
                $region76: #{tpu_custom_call.1} parent=62 // loop_footer_branch
                  %247 = sbr.rel target = $region72
                $region77: #{tpu_custom_call.1} parent=62 // loop_exit
                  _
              $region63: #{tpu_custom_call.1} parent=47 // pred_fallthru
                _
            $region48: #{tpu_custom_call.1} parent=43 // pred_fallthru
              _
            // Predicated region
            $region49: #{tpu_custom_call.1} parent=43 // pred_check
              _
            $region50: #{tpu_custom_call.1} parent=43 // pred_check_branch
              %222 = sbr.rel (0) target = $region52
            $region51: #{tpu_custom_call.1} parent=43 // pred_region
              loop: start=0, step=1, limit=1
              $region53: #{tpu_custom_call.1} parent=51 // loop_pre_header
                _
              $region54: #{tpu_custom_call.1} parent=51 // loop_header
                %s225 = sphi 0, %s229
                %p226 = scmp.ge.s32.totalorder %s225, 1
                %s230 = sphi %s216, %s216
                %s231 = sphi %s214, %s214
              $region55: #{tpu_custom_call.1} parent=51 // loop_header_branch
                %228 = sbr.rel (%p226) target = $region59
              $region56: #{tpu_custom_call.1} parent=51 // loop_body
                %v232 = vld [vmem:[%s230] sm:$0xf]
                %233 = vst [vmem:[%s231] sm:$0xf] %v232
                %v234 = vld [vmem:[%s230 + $0x8] sm:$0xf]
                %235 = vst [vmem:[%s231 + $0x4] sm:$0xf] %v234
              $region57: #{tpu_custom_call.1} parent=51 // loop_footer
                %s229 = sadd.s32 1, %s225
              $region58: #{tpu_custom_call.1} parent=51 // loop_footer_branch
                %224 = sbr.rel target = $region54
              $region59: #{tpu_custom_call.1} parent=51 // loop_exit
                _
            $region52: #{tpu_custom_call.1} parent=43 // pred_fallthru
              _
          $region44: #{tpu_custom_call.1} parent=39 // pred_fallthru
            _
          %259 = vnop
        $region40: #{tpu_custom_call.1} parent=35 // pred_fallthru
          _
      $region36: #{tpu_custom_call.1} parent=5 // pred_fallthru
        _
      %p260 = scmp.le.s32.totalorder 1, %s17
      %p261 = scmp.lt.s32.totalorder %s17, 3
      %p262 = pnand %p260, %p261
      %p263 = pneg %p262
      // Predicated region
      $region78: #{tpu_custom_call.1} parent=5 // pred_check
        _
      $region79: #{tpu_custom_call.1} parent=5 // pred_check_branch
        %265 = sbr.rel (%p262) target = $region81
      $region80: #{tpu_custom_call.1} parent=5 // pred_region
        %s266 = ssub.s32 %s17, 1
        %s267 = sand.u32 %s30, 1
        %s268 = sand.u32 %s30, 1
        %s269 = smul.addr %s268, 8
        %s270 = scalar_lea.vmem [#allocation3], %s269
        // Predicated region
        $region82: #{tpu_custom_call.1} parent=80 // pred_check
          %p271 = pneg %p43
        $region83: #{tpu_custom_call.1} parent=80 // pred_check_branch
          %273 = sbr.rel (%p271) target = $region85
        $region84: #{tpu_custom_call.1} parent=80 // pred_region
          _
        $region85: #{tpu_custom_call.1} parent=80 // pred_fallthru
          _
        %s274 = sand.u32 %s30, 1
        %s275 = sand.u32 %s30, 1
        %s276 = smul.addr %s275, 8
        %s277 = scalar_lea.vmem [#allocation3], %s276
        %p278 = pneg %p43
        %p279 = pneg %p40
        %p280 = pneg %p64
        %p281 = pneg %p61
        %p282 = pneg %p85
        %p283 = pneg %p82
        %p284 = pneg %p106
        %p285 = pneg %p103
        %p286 = pneg %p127
        %p287 = pneg %p124
        %p288 = pneg %p148
        %p289 = pneg %p145
        %p290 = pneg %p174
        %p291 = pneg %p171
        %s292 = sand.u32 %s161, 1
        %s293 = scalar_lea.sflag [#allocation5], %s292
        %s294 = sand.u32 %s161, 1
        %s295 = scalar_lea.vmem [#allocation4], %s294
        %v297 = vld [vmem:[%s270] sm:$0xf]
        %v298 = vld [vmem:[%s270 + $0x4] sm:$0x1]
        %v299 = vld [vmem:[%s1] sm:$0xf]
        %v300 = vld [vmem:[%s1 + $0x4] sm:$0xf]
        %v301 = vld [vmem:[%s1 + $0x8] sm:$0xf]
        %v302 = vld [vmem:[%s1 + $0xc] sm:$0xf]
        %v303 = vld [vmem:[%s1 + $0x10] sm:$0xf]
        %v304 = vld [vmem:[%s1 + $0x14] sm:$0xf]
        %v305 = vld [vmem:[%s1 + $0x18] sm:$0xf]
        %v306 = vld [vmem:[%s1 + $0x1c] sm:$0xf]
        %v315 = vunpack.c.l.b16 %v299
        %v316 = vunpack.c.l.b16 %v300
        %v317 = vunpack.c.l.b16 %v301
        %v318 = vunpack.c.l.b16 %v302
        %v319 = vunpack.c.l.b16 %v303
        %v320 = vunpack.c.l.b16 %v304
        %v321 = vunpack.c.l.b16 %v305
        %v322 = vunpack.c.l.b16 %v306
        %v323 = vpack.c.b16 %v316, %v315
        %v324 = vpack.c.b16 %v318, %v317
        %v325 = vpack.c.b16 %v320, %v319
        %v326 = vpack.c.b16 %v322, %v321
        %v329 = vunpack.c.l.b16 %v297
        %v330 = vunpack.c.l.b16 %v298
        %v331 = vpack.c.b16 %v330, %v329
        %vm332 = vcmask 80896
        %v334 = vsel %vm332, %v323, 0
        %v337 = vsel %vm332, %v324, 0
        %v340 = vsel %vm332, %v325, 0
        %v343 = vsel %vm332, %v326, 0
        %vm345 = vcmask 1044480
        %v347 = vsel %vm345, %v331, 0
        %349 = vmatprep.subr.bf16.mxu0 0
        %350 = vmatpush1.bf16.msra.mxu0 %v347
        %351 = vmatprep.subr.bf16.mxu0 0
        %352 = vmatpush1.bf16.msra.mxu0 0
        %353 = vmatprep.subr.bf16.mxu0 0
        %354 = vmatpush1.bf16.msra.mxu0 0
        %355 = vmatprep.subr.bf16.mxu0 0
        %356 = vmatpush1.bf16.msra.mxu0 0
        %357 = vmatprep.subr.bf16.mxu0 0
        %358 = vmatpush1.bf16.msra.mxu0 0
        %359 = vmatprep.subr.bf16.mxu0 0
        %360 = vmatpush1.bf16.msra.mxu0 0
        %361 = vmatprep.subr.bf16.mxu0 0
        %362 = vmatpush1.bf16.msra.mxu0 0
        %363 = vmatprep.subr.bf16.mxu0 0
        %364 = vmatpush1.bf16.msra.mxu0 0
        %365 = vmatprep.subr.bf16.mxu0 0
        %366 = vmatpush1.bf16.msra.mxu0 0
        %367 = vmatprep.subr.bf16.mxu0 0
        %368 = vmatpush1.bf16.msra.mxu0 0
        %369 = vmatprep.subr.bf16.mxu0 0
        %370 = vmatpush1.bf16.msra.mxu0 0
        %371 = vmatprep.subr.bf16.mxu0 0
        %372 = vmatpush1.bf16.msra.mxu0 0
        %373 = vmatprep.subr.bf16.mxu0 0
        %374 = vmatpush1.bf16.msra.mxu0 0
        %375 = vmatprep.subr.bf16.mxu0 0
        %376 = vmatpush1.bf16.msra.mxu0 0
        %377 = vmatprep.subr.bf16.mxu0 0
        %378 = vmatpush1.bf16.msra.mxu0 0
        %379 = vmatprep.subr.bf16.mxu0 0
        %380 = vmatpush1.bf16.msra.mxu0 0
        %381 = vmatprep.mubr.bf16.mxu0 0
        %382 = vmatmul.mubr.bf16.gmra.mrb[0].mxu0 %v334
        %v383 = vpop.f32.mrb[0].mxu0
        %v384 = vadd.f32 0.0, %v383
        %v385 = vpop.f32.mrb[0].mxu0
        %v386 = vpop.f32.mrb[0].mxu0
        %v387 = vadd.f32 0.0, %v386
        %v388 = vpop.f32.mrb[0].mxu0
        %389 = vmatprep.mubr.bf16.mxu0 0
        %390 = vmatmul.mubr.bf16.gmra.mrb[0].mxu0 %v337
        %v391 = vpop.f32.mrb[0].mxu0
        %v392 = vadd.f32 0.0, %v391
        %v393 = vpop.f32.mrb[0].mxu0
        %v394 = vpop.f32.mrb[0].mxu0
        %v395 = vadd.f32 0.0, %v394
        %v396 = vpop.f32.mrb[0].mxu0
        %397 = vmatprep.mubr.bf16.mxu0 0
        %398 = vmatmul.mubr.bf16.gmra.mrb[0].mxu0 %v340
        %v399 = vpop.f32.mrb[0].mxu0
        %v400 = vadd.f32 0.0, %v399
        %v401 = vpop.f32.mrb[0].mxu0
        %v402 = vpop.f32.mrb[0].mxu0
        %v403 = vadd.f32 0.0, %v402
        %v404 = vpop.f32.mrb[0].mxu0
        %405 = vmatprep.mubr.bf16.mxu0 0
        %406 = vmatmul.mubr.bf16.gmra.mrb[0].mxu0 %v343
        %v407 = vpop.f32.mrb[0].mxu0
        %v408 = vadd.f32 0.0, %v407
        %v409 = vpop.f32.mrb[0].mxu0
        %v410 = vpop.f32.mrb[0].mxu0
        %v411 = vadd.f32 0.0, %v410
        %v412 = vpop.f32.mrb[0].mxu0
        %413 = vdwg.mxu0
        %v414 = vmax.f32 %v384, 0.0
        %v415 = vmax.f32 %v387, 0.0
        %v416 = vmax.f32 %v392, 0.0
        %v417 = vmax.f32 %v395, 0.0
        %v418 = vmax.f32 %v400, 0.0
        %v419 = vmax.f32 %v403, 0.0
        %v420 = vmax.f32 %v408, 0.0
        %v421 = vmax.f32 %v411, 0.0
        %v422 = vpack.c.bf16 %v415, %v414
        %v423 = vpack.c.bf16 %v417, %v416
        %v424 = vpack.c.bf16 %v419, %v418
        %v425 = vpack.c.bf16 %v421, %v420
        %v426 = vld [vmem:[%s2] sm:$0xf]
        %v427 = vld [vmem:[%s2 + $0x4] sm:$0xf]
        %v428 = vld [vmem:[%s2 + $0x8] sm:$0xf]
        %v429 = vld [vmem:[%s2 + $0xc] sm:$0xf]
        %v430 = vld [vmem:[%s2 + $0x10] sm:$0xf]
        %v431 = vld [vmem:[%s2 + $0x14] sm:$0xf]
        %v432 = vld [vmem:[%s2 + $0x18] sm:$0xf]
        %v433 = vld [vmem:[%s2 + $0x1c] sm:$0xf]
        %v434 = vld [vmem:[%s3] sm:$0xff]
        %v435 = vld [vmem:[%s3 + $0x8] sm:$0xff]
        %v436 = vld [vmem:[%s3 + $0x10] sm:$0xff]
        %v437 = vld [vmem:[%s3 + $0x18] sm:$0xff]
        %v438 = vld [vmem:[%s3 + $0x20] sm:$0xff]
        %v439 = vld [vmem:[%s3 + $0x28] sm:$0xff]
        %v440 = vld [vmem:[%s3 + $0x30] sm:$0xff]
        %v441 = vld [vmem:[%s3 + $0x38] sm:$0xff]
        %443 = vset.pattern.permute.xlu0 0
        %444 = vperm.xlu0 %443, %v434
        %v445 = vpop.permute.xlu0 %444
        %448 = vset.pattern.permute.xlu0 0
        %449 = vperm.xlu0 %448, %v435
        %v450 = vpop.permute.xlu0 %449
        %453 = vset.pattern.permute.xlu0 0
        %454 = vperm.xlu0 %453, %v436
        %v455 = vpop.permute.xlu0 %454
        %458 = vset.pattern.permute.xlu0 0
        %459 = vperm.xlu0 %458, %v437
        %v460 = vpop.permute.xlu0 %459
        %463 = vset.pattern.permute.xlu0 0
        %464 = vperm.xlu0 %463, %v438
        %v465 = vpop.permute.xlu0 %464
        %468 = vset.pattern.permute.xlu0 0
        %469 = vperm.xlu0 %468, %v439
        %v470 = vpop.permute.xlu0 %469
        %473 = vset.pattern.permute.xlu0 0
        %474 = vperm.xlu0 %473, %v440
        %v475 = vpop.permute.xlu0 %474
        %478 = vset.pattern.permute.xlu0 0
        %479 = vperm.xlu0 %478, %v441
        %v480 = vpop.permute.xlu0 %479
        %v490 = vunpack.c.l.b16 %v426
        %v491 = vunpack.c.l.b16 %v427
        %v492 = vunpack.c.l.b16 %v428
        %v493 = vunpack.c.l.b16 %v429
        %v494 = vunpack.c.l.b16 %v430
        %v495 = vunpack.c.l.b16 %v431
        %v496 = vunpack.c.l.b16 %v432
        %v497 = vunpack.c.l.b16 %v433
        %v498 = vpack.c.b16 %v491, %v490
        %v499 = vpack.c.b16 %v493, %v492
        %v500 = vpack.c.b16 %v495, %v494
        %v501 = vpack.c.b16 %v497, %v496
        %vm502 = vcmask 523264
        %v504 = vsel %vm502, %v498, 0
        %v507 = vsel %vm502, %v499, 0
        %v510 = vsel %vm502, %v500, 0
        %v513 = vsel %vm502, %v501, 0
        %515 = vmatprep.subr.bf16.mxu0 0
        %516 = vmatpush1.bf16.msra.mxu0 %v422
        %517 = vmatprep.subr.bf16.mxu0 0
        %518 = vmatpush1.bf16.msra.mxu0 %v423
        %519 = vmatprep.subr.bf16.mxu0 0
        %520 = vmatpush1.bf16.msra.mxu0 %v424
        %521 = vmatprep.subr.bf16.mxu0 0
        %522 = vmatpush1.bf16.msra.mxu0 %v425
        %523 = vmatprep.subr.bf16.mxu0 0
        %524 = vmatpush1.bf16.msra.mxu0 0
        %525 = vmatprep.subr.bf16.mxu0 0
        %526 = vmatpush1.bf16.msra.mxu0 0
        %527 = vmatprep.subr.bf16.mxu0 0
        %528 = vmatpush1.bf16.msra.mxu0 0
        %529 = vmatprep.subr.bf16.mxu0 0
        %530 = vmatpush1.bf16.msra.mxu0 0
        %531 = vmatprep.subr.bf16.mxu0 0
        %532 = vmatpush1.bf16.msra.mxu0 0
        %533 = vmatprep.subr.bf16.mxu0 0
        %534 = vmatpush1.bf16.msra.mxu0 0
        %535 = vmatprep.subr.bf16.mxu0 0
        %536 = vmatpush1.bf16.msra.mxu0 0
        %537 = vmatprep.subr.bf16.mxu0 0
        %538 = vmatpush1.bf16.msra.mxu0 0
        %539 = vmatprep.subr.bf16.mxu0 0
        %540 = vmatpush1.bf16.msra.mxu0 0
        %541 = vmatprep.subr.bf16.mxu0 0
        %542 = vmatpush1.bf16.msra.mxu0 0
        %543 = vmatprep.subr.bf16.mxu0 0
        %544 = vmatpush1.bf16.msra.mxu0 0
        %545 = vmatprep.subr.bf16.mxu0 0
        %546 = vmatpush1.bf16.msra.mxu0 0
        %547 = vmatprep.mubr.bf16.mxu0 0
        %548 = vmatmul.mubr.bf16.gmra.mrb[0].mxu0 %v504
        %v549 = vpop.f32.mrb[0].mxu0
        %v550 = vadd.f32 %v445, %v549
        %v551 = vpop.f32.mrb[0].mxu0
        %v552 = vpop.f32.mrb[0].mxu0
        %v553 = vadd.f32 %v450, %v552
        %v554 = vpop.f32.mrb[0].mxu0
        %555 = vmatprep.mubr.bf16.mxu0 0
        %556 = vmatmul.mubr.bf16.gmra.mrb[0].mxu0 %v507
        %v557 = vpop.f32.mrb[0].mxu0
        %v558 = vadd.f32 %v455, %v557
        %v559 = vpop.f32.mrb[0].mxu0
        %v560 = vpop.f32.mrb[0].mxu0
        %v561 = vadd.f32 %v460, %v560
        %v562 = vpop.f32.mrb[0].mxu0
        %563 = vmatprep.mubr.bf16.mxu0 0
        %564 = vmatmul.mubr.bf16.gmra.mrb[0].mxu0 %v510
        %v565 = vpop.f32.mrb[0].mxu0
        %v566 = vadd.f32 %v465, %v565
        %v567 = vpop.f32.mrb[0].mxu0
        %v568 = vpop.f32.mrb[0].mxu0
        %v569 = vadd.f32 %v470, %v568
        %v570 = vpop.f32.mrb[0].mxu0
        %571 = vmatprep.mubr.bf16.mxu0 0
        %572 = vmatmul.mubr.bf16.gmra.mrb[0].mxu0 %v513
        %v573 = vpop.f32.mrb[0].mxu0
        %v574 = vadd.f32 %v475, %v573
        %v575 = vpop.f32.mrb[0].mxu0
        %v576 = vpop.f32.mrb[0].mxu0
        %v577 = vadd.f32 %v480, %v576
        %v578 = vpop.f32.mrb[0].mxu0
        %579 = vdwg.mxu0
        %v580 = vmax.f32 %v550, 0.0
        %v581 = vmax.f32 %v553, 0.0
        %v582 = vmax.f32 %v558, 0.0
        %v583 = vmax.f32 %v561, 0.0
        %v584 = vmax.f32 %v566, 0.0
        %v585 = vmax.f32 %v569, 0.0
        %v586 = vmax.f32 %v574, 0.0
        %v587 = vmax.f32 %v577, 0.0
        %v588 = vld [vmem:[%s4] sm:$0xff]
        %v589 = vld [vmem:[%s4 + $0x8] sm:$0xff]
        %v590 = vld [vmem:[%s4 + $0x10] sm:$0xff]
        %v591 = vld [vmem:[%s4 + $0x18] sm:$0xff]
        %v592 = vld [vmem:[%s4 + $0x20] sm:$0xff]
        %v593 = vld [vmem:[%s4 + $0x28] sm:$0xff]
        %v594 = vld [vmem:[%s4 + $0x30] sm:$0xff]
        %v595 = vld [vmem:[%s4 + $0x38] sm:$0xff]
        %597 = vset.pattern.permute.xlu0 0
        %598 = vperm.xlu0 %597, %v588
        %v599 = vpop.permute.xlu0 %598
        %602 = vset.pattern.permute.xlu0 0
        %603 = vperm.xlu0 %602, %v589
        %v604 = vpop.permute.xlu0 %603
        %607 = vset.pattern.permute.xlu0 0
        %608 = vperm.xlu0 %607, %v590
        %v609 = vpop.permute.xlu0 %608
        %612 = vset.pattern.permute.xlu0 0
        %613 = vperm.xlu0 %612, %v591
        %v614 = vpop.permute.xlu0 %613
        %617 = vset.pattern.permute.xlu0 0
        %618 = vperm.xlu0 %617, %v592
        %v619 = vpop.permute.xlu0 %618
        %622 = vset.pattern.permute.xlu0 0
        %623 = vperm.xlu0 %622, %v593
        %v624 = vpop.permute.xlu0 %623
        %627 = vset.pattern.permute.xlu0 0
        %628 = vperm.xlu0 %627, %v594
        %v629 = vpop.permute.xlu0 %628
        %632 = vset.pattern.permute.xlu0 0
        %633 = vperm.xlu0 %632, %v595
        %v634 = vpop.permute.xlu0 %633
        %v636 = vmul.f32 %v599, %v580
        %v637 = vmul.f32 %v604, %v581
        %v638 = vmul.f32 %v609, %v582
        %v639 = vmul.f32 %v614, %v583
        %v640 = vmul.f32 %v619, %v584
        %v641 = vmul.f32 %v624, %v585
        %v642 = vmul.f32 %v629, %v586
        %v643 = vmul.f32 %v634, %v587
        %v644 = vadd.f32 %v636, %v637
        %v645 = vadd.f32 %v644, %v638
        %v646 = vadd.f32 %v645, %v639
        %v647 = vadd.f32 %v646, %v640
        %v648 = vadd.f32 %v647, %v641
        %v649 = vadd.f32 %v648, %v642
        %v650 = vadd.f32 %v649, %v643
        %v651 = vrot.slane %v650, 4
        %v652 = vadd.f32 %v650, %v651
        %v653 = vrot.slane %v652, 2
        %v654 = vadd.f32 %v652, %v653
        %v655 = vrot.slane %v654, 1
        %v656 = vadd.f32 %v654, %v655
        %v657 = vld [vmem:[#allocation2] sm:$0x1]
        %659 = vset.pattern.permute.xlu0 0
        %660 = vperm.xlu0 %659, %v657
        %v661 = vpop.permute.xlu0 %660
        %v663 = vlaneseq
        %v664 = vshrl.u32 %v663, 7
        %v665 = vsub.s32 0, %v664
        %v666 = vrot.slane %v661, %v665
        %v667 = vadd.f32 %v656, %v666
        %668 = vst [vmem:[%s295] sm:$0x1] %v667
        %s669 = sand.u32 %s161, 1
        %s670 = scalar_lea.sflag [#allocation5], %s669
        %s671 = sand.u32 %s161, 1
        %s672 = scalar_lea.vmem [#allocation4], %s671
        // Predicated region
        $region86: #{tpu_custom_call.1} parent=80 // pred_check
          %p673 = pneg %p171
        $region87: #{tpu_custom_call.1} parent=80 // pred_check_branch
          %675 = sbr.rel (%p673) target = $region89
        $region88: #{tpu_custom_call.1} parent=80 // pred_region
          %s677 = ssub.s32 16, 16
          %678 = vsyncadd %s670, %s677
          %s679 = smul.addr %s22, 16
          %s680 = scalar_lea.hbm %s6, %s679
          %s682 = sshll.u32 %s672, 4
          %s683 = int_to_ptr.vmem [resolvable:$true] %s682
          %685 = dma.vmem_to_hbm [thread:$0]  %s683, 16, %s680, %s670
        $region89: #{tpu_custom_call.1} parent=80 // pred_fallthru
          _
      $region81: #{tpu_custom_call.1} parent=5 // pred_fallthru
        _
      %p686 = scmp.le.s32.totalorder 2, %s17
      // Predicated region
      $region90: #{tpu_custom_call.1} parent=5 // pred_check
        %p687 = pneg %p686
      $region91: #{tpu_custom_call.1} parent=5 // pred_check_branch
        %689 = sbr.rel (%p687) target = $region93
      $region92: #{tpu_custom_call.1} parent=5 // pred_region
        %s690 = ssub.s32 %s17, 2
        // Predicated region
        $region94: #{tpu_custom_call.1} parent=92 // pred_check
          %p691 = pneg %p177
        $region95: #{tpu_custom_call.1} parent=92 // pred_check_branch
          %693 = sbr.rel (%p691) target = $region97
        $region96: #{tpu_custom_call.1} parent=92 // pred_region
          %s694 = sand.u32 %s162, 1
          %s695 = scalar_lea.sflag [#allocation5], %s694
          %s696 = sand.u32 %s162, 1
          %s697 = scalar_lea.vmem [#allocation4], %s696
          %698 = dma.done %s695, 16
        $region97: #{tpu_custom_call.1} parent=92 // pred_fallthru
          _
      $region93: #{tpu_custom_call.1} parent=5 // pred_fallthru
        _
    $region6: #{tpu_custom_call.1} parent=1 // loop_footer
      %s21 = sadd.s32 1, %s17
    $region7: #{tpu_custom_call.1} parent=1 // loop_footer_branch
      %16 = sbr.rel target = $region3
    $region8: #{tpu_custom_call.1} parent=1 // loop_exit
      _
    %699 = vsyncpa [#allocation5], 1
    %s700 = scalar_lea.sflag [#allocation5], 1
    %701 = vsyncpa %s700, 1

</llo_original>
